<compile_context>
chip_gen: v7x
topology: tpu7x:2x2x1
jax: 0.10.0
libtpu: 0.0.40
codegen_flags: <defaults>
</compile_context>

<pallas_src>
import jax
import jax.numpy as jnp
from jax import lax
from jax.experimental import pallas as pl
from jax.experimental.pallas import tpu as pltpu

BN_EPS = 1e-5


# ----------------------------- Pallas kernel --------------------------------

def _stripe_conv3x3_kernel(q_ref, w_ref, b_ref, o_ref):
    """3x3 conv + folded-BN shift + ReLU on one padded input stripe.

    q_ref: (1, (th+2)*W, 3*C) bf16  padded image rows flattened with W on the
                                    sublane axis; the 3 kw-taps folded with C
                                    on the lane axis.
    w_ref: (3, 3*C, 128)      bf16  BN-scale-folded weights, one slab per kh.
    b_ref: (1, 128)           f32   folded BN shift (zero past cout).
    o_ref: (1, th*W, 128)     bf16  lane-dense output rows for this stripe.

    Output row m needs input rows m, m+W, m+2W (one per kh tap), so the conv
    is three row-shifted matmuls accumulated in f32 on the MXU.
    """
    m = o_ref.shape[1]                        # th * W      (static)
    w_rows = (q_ref.shape[1] - m) // 2        # == W        (static)

    acc = jnp.dot(q_ref[0, 0:m, :], w_ref[0],
                  preferred_element_type=jnp.float32)
    acc = acc + jnp.dot(q_ref[0, w_rows:w_rows + m, :], w_ref[1],
                        preferred_element_type=jnp.float32)
    acc = acc + jnp.dot(q_ref[0, 2 * w_rows:2 * w_rows + m, :], w_ref[2],
                        preferred_element_type=jnp.float32)

    y = jnp.maximum(acc + b_ref[...], 0.0)    # folded BN shift + ReLU (f32)
    o_ref[0] = y.astype(o_ref.dtype)          # bf16 store, full 128 lanes


def _pick_stripes(N, H, W, lanes_in, lanes_out, budget_bytes=4 << 20):
    """Output rows per stripe so double-buffered in+out blocks stay well under
    the scoped VMEM limit (v7x: 64 MiB physical / ~32 MiB scoped)."""
    per_row = 2 * 2 * W * (lanes_in + lanes_out)     # bf16, double-buffered
    th = int(min(H, max(1, budget_bytes // max(per_row, 1) - 2)))
    ns = -(-H // th)
    if (N * ns) % 2 == 1 and ns < H:                 # even grid steps (v7x: 2 TCs)
        ns += 1
    th = -(-H // ns)
    return th, ns


def conv_bn_relu(x_nhwc, p):
    """conv(3x3, stride 1, pad 1, no bias) + BN(eval, folded) + ReLU."""
    w, scale, shift = p['w'], p['scale'], p['shift']           # w: HWIO f32
    kh, kw, cin, cout = w.shape
    assert kh == 3 and kw == 3
    N, H, W, C = x_nhwc.shape
    assert C == cin
    Cp = -(-cout // 128) * 128          # lane-dense output width (=128 here)

    # --- glue: pad + fold the 3 kw-taps into lanes (bf16: 3x bytes, not 9x) --
    xb = x_nhwc.astype(jnp.bfloat16)
    xp = jnp.pad(xb, ((0, 0), (1, 1), (1, 1), (0, 0)))         # (N,H+2,W+2,C)
    # pw[n, r, j, k*C + ci] == xp[n, r, j + k, ci]             # (N,H+2,W,3C)
    pw = jnp.concatenate([xp[:, :, k:k + W, :] for k in range(3)], axis=-1)

    th, ns = _pick_stripes(N, H, W, 3 * C, Cp)
    Hp = th * ns
    if Hp > H:                                                  # bottom zero rows
        pw = jnp.pad(pw, ((0, 0), (0, Hp - H), (0, 0), (0, 0)))
    if ns == 1:
        q = pw.reshape(N, (H + 2) * W, 3 * C)
    else:
        stripes = jnp.stack(
            [pw[:, s * th:s * th + th + 2] for s in range(ns)], axis=1)
        q = stripes.reshape(N * ns, (th + 2) * W, 3 * C)

    # --- weights: fold BN scale in f32, pad cout -> 128 lanes, cast bf16 -----
    wf = (w * scale).reshape(3, 3 * cin, cout)         # (kh, kw*cin, cout)
    w_p = jnp.pad(wf, ((0, 0), (0, 0), (0, Cp - cout))).astype(jnp.bfloat16)
    b_p = jnp.pad(shift, ((0, Cp - cout),)).reshape(1, Cp)      # f32 shift

    out = pl.pallas_call(
        _stripe_conv3x3_kernel,
        out_shape=jax.ShapeDtypeStruct((N * ns, th * W, Cp), jnp.bfloat16),
        grid=(N * ns,),
        in_specs=[
            pl.BlockSpec((1, (th + 2) * W, 3 * C), lambda i: (i, 0, 0)),
            pl.BlockSpec((3, 3 * cin, Cp), lambda i: (0, 0, 0)),
            pl.BlockSpec((1, Cp), lambda i: (0, 0)),
        ],
        out_specs=pl.BlockSpec((1, th * W, Cp), lambda i: (i, 0, 0)),
        compiler_params=pltpu.CompilerParams(
            dimension_semantics=("parallel",)),
    )(q, w_p, b_p)

    # drop padded rows / padded output lanes
    y = out.reshape(N, Hp, W, Cp)[:, :H, :, :cout]
    return y                                                    # bf16 NHWC


# ------------------------------- glue (JAX) ---------------------------------

def chunk_channels(x, chunks):
    """torch.chunk(x, chunks, dim=channel) semantics on NHWC last axis."""
    c = x.shape[-1]
    size = -(-c // chunks)
    return [x[..., i * size:min((i + 1) * size, c)]
            for i in range(chunks) if i * size < c]


def hsblock_branch_channels(in_ch, s):
    """Mirror HSBlock_rfb.__init__ channel bookkeeping: branch i conv is CxC."""
    if in_ch % s == 0:
        g, g_last = in_ch // s, in_ch // s
    else:
        g, g_last = in_ch // s + 1, in_ch % s
    chans, acc = [], 0
    for i in range(1, s):
        if i == 1:
            c = g
            acc = c // 2
        elif i == s - 1:
            c = g_last + acc
        else:
            c = g + acc
            acc = c // 2
        chans.append(c)
    return chans


def hsblock_forward(params, x_nchw, s=4):
    x = jnp.transpose(x_nchw, (0, 2, 3, 1))      # NCHW -> NHWC (C on lanes)
    xs = chunk_channels(x, s)
    out_parts = [xs[0]]
    for i in range(1, s):
        y = conv_bn_relu(xs[i], params['branch%d' % i])        # bf16
        if i == s - 1:
            out_parts.append(y)
        else:
            c = y.shape[-1]
            c1 = -(-c // 2)                      # torch.chunk(2): ceil / floor
            out_parts.append(y[..., :c1])
            # keep the next branch's input in bf16 (its kernel input dtype)
            xs[i + 1] = jnp.concatenate(
                [xs[i + 1].astype(jnp.bfloat16), y[..., c1:]], axis=-1)
    out = jnp.concatenate([p.astype(jnp.float32) for p in out_parts], axis=-1)
    return jnp.transpose(out, (0, 3, 1, 2))      # back to NCHW


# -------------------------- pure-JAX reference ------------------------------

def _conv_bn_relu_ref(x, p):
    w = p['w']
    pad = (w.shape[0] - 1) // 2
    y = lax.conv_general_dilated(
        x, w, (1, 1), ((pad, pad), (pad, pad)),
        dimension_numbers=('NHWC', 'HWIO', 'NHWC'),
        precision=lax.Precision.HIGHEST)
    y = y * p['scale'] + p['shift']
    return jnp.maximum(y, 0.0)


def ref_forward(params, x_nchw, s=4):
    x = jnp.transpose(x_nchw, (0, 2, 3, 1))
    xs = chunk_channels(x, s)
    out_parts = [xs[0]]
    for i in range(1, s):
        y = _conv_bn_relu_ref(xs[i], params['branch%d' % i])
        if i == s - 1:
            out_parts.append(y)
        else:
            c = y.shape[-1]
            c1 = -(-c // 2)
            out_parts.append(y[..., :c1])
            xs[i + 1] = jnp.concatenate([xs[i + 1], y[..., c1:]], axis=-1)
    out = jnp.concatenate(out_parts, axis=-1)
    return jnp.transpose(out, (0, 3, 1, 2))


# ------------------------------ parameters ----------------------------------

def make_conv_bn(key, ksize, cin, cout):
    k1, k2, k3, k4, k5 = jax.random.split(key, 5)
    w = jax.random.normal(k1, (ksize, ksize, cin, cout), jnp.float32) * 0.05
    gamma = jax.random.uniform(k2, (cout,), jnp.float32, 0.8, 1.2)
    beta = jax.random.normal(k3, (cout,), jnp.float32) * 0.1
    mean = jax.random.normal(k4, (cout,), jnp.float32) * 0.1
    var = jax.random.uniform(k5, (cout,), jnp.float32, 0.5, 1.5)
    scale = gamma / jnp.sqrt(var + BN_EPS)
    shift = beta - mean * scale
    return {'w': w, 'scale': scale, 'shift': shift}


if __name__ == "__main__":
    key = jax.random.PRNGKey(0)
    in_ch, s, ksize = 64, 4, 3
    N, H, W = 2, 16, 16

    branch_ch = hsblock_branch_channels(in_ch, s)       # [16, 24, 28]
    keys = jax.random.split(key, s)
    params = {'branch%d' % i: make_conv_bn(keys[i - 1], ksize,
                                           branch_ch[i - 1], branch_ch[i - 1])
              for i in range(1, s)}

    x = jax.random.normal(keys[s - 1], (N, in_ch, H, W), jnp.float32)

    out = jax.block_until_ready(hsblock_forward(params, x, s=s))
    ref = jax.block_until_ready(ref_forward(params, x, s=s))

    assert out.shape == (N, in_ch, H, W), out.shape
    max_err = float(jnp.max(jnp.abs(out - ref)))
    # bf16 MXU operands + bf16 output stores vs. an f32 HIGHEST reference over
    # a 3-deep conv chain: allow standard mixed-precision slack.
    assert max_err < 7.5e-2, f"max abs error vs reference: {max_err}"
    print("KERNEL_OK")
</pallas_src>

<mosaic_0001>
module attributes {stable_mosaic.version = 11 : i64} {
  func.func @_stripe_conv3x3_kernel(%arg0: i32, %arg1: memref<1x288x48xbf16, #tpu.memory_space<vmem>>, %arg2: memref<3x48x128xbf16, #tpu.memory_space<vmem>>, %arg3: memref<1x128xf32, #tpu.memory_space<vmem>>, %arg4: memref<1x256x128xbf16, #tpu.memory_space<vmem>>) attributes {dimension_semantics = [#tpu.dimension_semantics<parallel>], iteration_bounds = array<i64: 2>, scalar_prefetch = 0 : i64, scratch_operands = 0 : i64, tpu.core_type = #tpu.core_type<tc>, window_params = [{transform_indices = @transform_0, window_bounds = array<i64: 1, 288, 48>}, {pipeline_mode = #tpu.pipeline_mode<synchronous>, transform_indices = @transform_1, window_bounds = array<i64: 3, 48, 128>}, {pipeline_mode = #tpu.pipeline_mode<synchronous>, transform_indices = @transform_2, window_bounds = array<i64: 1, 128>}, {transform_indices = @transform_3, window_bounds = array<i64: 1, 256, 128>}]} {
    %c0 = arith.constant 0 : index
    %c0_0 = arith.constant 0 : index
    %c0_1 = arith.constant 0 : index
    %0 = vector.load %arg1[%c0, %c0_0, %c0_1] : memref<1x288x48xbf16, #tpu.memory_space<vmem>>, vector<1x256x48xbf16>
    %1 = vector.shape_cast %0 : vector<1x256x48xbf16> to vector<256x48xbf16>
    %c0_2 = arith.constant 0 : index
    %c0_3 = arith.constant 0 : index
    %c0_4 = arith.constant 0 : index
    %2 = vector.load %arg2[%c0_2, %c0_3, %c0_4] : memref<3x48x128xbf16, #tpu.memory_space<vmem>>, vector<1x48x128xbf16>
    %3 = vector.shape_cast %2 : vector<1x48x128xbf16> to vector<48x128xbf16>
    %cst = arith.constant dense<0.000000e+00> : vector<256x128xf32>
    %4 = tpu.matmul %1, %3, %cst {dimension_numbers = #tpu.dot_dimension_numbers<[1], [0], [0], [1], [0, 0, 1, 1], [], []>} : vector<256x48xbf16>, vector<48x128xbf16>, vector<256x128xf32> -> vector<256x128xf32>
    %c0_5 = arith.constant 0 : index
    %c16 = arith.constant 16 : index
    %c0_6 = arith.constant 0 : index
    %5 = vector.load %arg1[%c0_5, %c16, %c0_6] : memref<1x288x48xbf16, #tpu.memory_space<vmem>>, vector<1x256x48xbf16>
    %6 = vector.shape_cast %5 : vector<1x256x48xbf16> to vector<256x48xbf16>
    %c1 = arith.constant 1 : index
    %c0_7 = arith.constant 0 : index
    %c0_8 = arith.constant 0 : index
    %7 = vector.load %arg2[%c1, %c0_7, %c0_8] : memref<3x48x128xbf16, #tpu.memory_space<vmem>>, vector<1x48x128xbf16>
    %8 = vector.shape_cast %7 : vector<1x48x128xbf16> to vector<48x128xbf16>
    %cst_9 = arith.constant dense<0.000000e+00> : vector<256x128xf32>
    %9 = tpu.matmul %6, %8, %cst_9 {dimension_numbers = #tpu.dot_dimension_numbers<[1], [0], [0], [1], [0, 0, 1, 1], [], []>} : vector<256x48xbf16>, vector<48x128xbf16>, vector<256x128xf32> -> vector<256x128xf32>
    %10 = arith.addf %4, %9 : vector<256x128xf32>
    %c0_10 = arith.constant 0 : index
    %c32 = arith.constant 32 : index
    %c0_11 = arith.constant 0 : index
    %11 = vector.load %arg1[%c0_10, %c32, %c0_11] : memref<1x288x48xbf16, #tpu.memory_space<vmem>>, vector<1x256x48xbf16>
    %12 = vector.shape_cast %11 : vector<1x256x48xbf16> to vector<256x48xbf16>
    %c2 = arith.constant 2 : index
    %c0_12 = arith.constant 0 : index
    %c0_13 = arith.constant 0 : index
    %13 = vector.load %arg2[%c2, %c0_12, %c0_13] : memref<3x48x128xbf16, #tpu.memory_space<vmem>>, vector<1x48x128xbf16>
    %14 = vector.shape_cast %13 : vector<1x48x128xbf16> to vector<48x128xbf16>
    %cst_14 = arith.constant dense<0.000000e+00> : vector<256x128xf32>
    %15 = tpu.matmul %12, %14, %cst_14 {dimension_numbers = #tpu.dot_dimension_numbers<[1], [0], [0], [1], [0, 0, 1, 1], [], []>} : vector<256x48xbf16>, vector<48x128xbf16>, vector<256x128xf32> -> vector<256x128xf32>
    %16 = arith.addf %10, %15 : vector<256x128xf32>
    %c0_15 = arith.constant 0 : index
    %c0_16 = arith.constant 0 : index
    %17 = vector.load %arg3[%c0_15, %c0_16] : memref<1x128xf32, #tpu.memory_space<vmem>>, vector<1x128xf32>
    %18 = vector.broadcast %17 : vector<1x128xf32> to vector<256x128xf32>
    %19 = arith.addf %16, %18 : vector<256x128xf32>
    %cst_17 = arith.constant 0.000000e+00 : f32
    %20 = vector.broadcast %cst_17 : f32 to vector<256x128xf32>
    %21 = arith.maximumf %19, %20 : vector<256x128xf32>
    %22 = arith.truncf %21 : vector<256x128xf32> to vector<256x128xbf16>
    %c0_18 = arith.constant 0 : index
    %c0_19 = arith.constant 0 : index
    %c0_20 = arith.constant 0 : index
    %23 = vector.load %arg4[%c0_18, %c0_19, %c0_20] : memref<1x256x128xbf16, #tpu.memory_space<vmem>>, vector<1x256x128xbf16>
    %24 = vector.shape_cast %23 : vector<1x256x128xbf16> to vector<256x128xbf16>
    %25 = vector.shape_cast %22 : vector<256x128xbf16> to vector<1x256x128xbf16>
    tpu.vector_store %arg4[%c0_18, %c0_19, %c0_20], %25 {strides = array<i32>} : memref<1x256x128xbf16, #tpu.memory_space<vmem>>, vector<1x256x128xbf16>,
    return
  }
  func.func @transform_0(%arg0: i32) -> (i32, i32, i32) {
    %c0_i32 = arith.constant 0 : i32
    %c0_i32_0 = arith.constant 0 : i32
    %c0_i32_1 = arith.constant 0 : i32
    return %arg0, %c0_i32, %c0_i32_0 : i32, i32, i32
  }
  func.func @transform_1(%arg0: i32) -> (i32, i32, i32) {
    %c0_i32 = arith.constant 0 : i32
    %c0_i32_0 = arith.constant 0 : i32
    %c0_i32_1 = arith.constant 0 : i32
    %c0_i32_2 = arith.constant 0 : i32
    return %c0_i32, %c0_i32_0, %c0_i32_1 : i32, i32, i32
  }
  func.func @transform_2(%arg0: i32) -> (i32, i32) {
    %c0_i32 = arith.constant 0 : i32
    %c0_i32_0 = arith.constant 0 : i32
    %c0_i32_1 = arith.constant 0 : i32
    return %c0_i32, %c0_i32_0 : i32, i32
  }
  func.func @transform_3(%arg0: i32) -> (i32, i32, i32) {
    %c0_i32 = arith.constant 0 : i32
    %c0_i32_0 = arith.constant 0 : i32
    %c0_i32_1 = arith.constant 0 : i32
    return %arg0, %c0_i32, %c0_i32_0 : i32, i32, i32
  }
}

</mosaic_0001>

<llo_original>
// kernel: tpu_custom_call.1
$region0: #{tpu_custom_call.1}
  #allocation0 [shape = 'u32[]', space=smem, size = 0x4, offset = 0x4, fixed_abs, tag = 'smem constant byte address 0x4 - core index']
  #allocation1 [shape = 'u32[144,128]{1,0:T(1,128)}', space=vmem, size = 0x12000, scoped, tag = 'internal scratch']
  %s0 = inlined_call_operand.vmem [shape: bf16[2,288,48], index: 0, kind: input, shape index: {}]
  %s1 = inlined_call_operand.vmem [shape: bf16[3,48,128], index: 1, kind: input, shape index: {}]
  %s2 = inlined_call_operand.vmem [shape: f32[1,128], index: 2, kind: input, shape index: {}]
  %s3 = inlined_call_operand.hbm [shape: bf16[2,256,128], index: 3, kind: output, shape index: {}]
  %s4 = sld [smem:[#allocation0]]
  $region45: #{tpu_custom_call.1} parent=0
    _
  %s6 = ssub.s32 1, %s4
  %s7 = scalar_select 0, %s6, %s4
  $region1: #{tpu_custom_call.1} parent=0
    #allocation2 [shape = 'u8[131072]{0}', space=vmem, size = 0x20000, scoped, tag = 'output window, operand 0']
    #allocation3 [shape = 's32[2]{0}', space=sflag, size = 0x8, scoped, tag = 'scoped memory for tpu_custom_call.1']
    %8 = vsyncpa [#allocation3], 0
    %s9 = scalar_lea.sflag [#allocation3], 1
    %10 = vsyncpa %s9, 0
    loop: start=0, step=1, limit=4
    $region2: #{tpu_custom_call.1} parent=1 // loop_pre_header
      _
    $region3: #{tpu_custom_call.1} parent=1 // loop_header
      %s12 = sphi 0, %s16
      %p13 = scmp.ge.s32.totalorder %s12, 4
      %s22 = sphi 0, %s24
      %s25 = sphi 0, %s22
      %s26 = sphi 0, %s25
      %s42 = sphi 0, %s26
      %s46 = sphi 0, %s46
      %s48 = sphi 0, %s46
      %s49 = sphi 0, %s48
      %s63 = sphi 0, %s49
      %s67 = sphi 0, %s67
      %s69 = sphi 0, %s67
      %s70 = sphi 0, %s69
      %s84 = sphi 0, %s70
      %s90 = sphi 0, %s92
      %s93 = sphi 0, %s90
      %s94 = sphi 0, %s93
      %s110 = sphi 0, %s94
    $region4: #{tpu_custom_call.1} parent=1 // loop_header_branch
      %15 = sbr.rel (%p13) target = $region8
    $region5: #{tpu_custom_call.1} parent=1 // loop_body
      %s17 = ssub.s32 %s12, 1
      %s18 = ssub.s32 %s12, 2
      %s19 = sadd.s32 %s12, 1
      %s20 = ssub.s32 %s12, %s19
      %p21 = scmp.eq.s32.totalorder %s20, 0
      %s23 = sadd.s32 %s22, 1
      %s24 = scalar_select %p21, %s22, %s23
      %p27 = pneg %p21
      %p28 = scmp.eq.s32.totalorder %s12, 1
      %p29 = por %p27, %p28
      %p30 = scmp.ne.s32.totalorder %s22, %s25
      %p31 = scmp.eq.s32.totalorder %s12, 0
      %p32 = por %p30, %p31
      %p33 = scmp.ne.s32.totalorder %s22, %s25
      %p34 = scmp.eq.s32.totalorder %s17, 1
      %p35 = por %p33, %p34
      %p36 = scmp.ne.s32.totalorder %s25, %s26
      %p37 = scmp.eq.s32.totalorder %s17, 0
      %p38 = por %p36, %p37
      %p39 = scmp.ne.s32.totalorder %s25, %s26
      %p40 = scmp.eq.s32.totalorder %s18, 1
      %p41 = por %p39, %p40
      %p43 = scmp.ne.s32.totalorder %s26, %s42
      %p44 = scmp.eq.s32.totalorder %s18, 0
      %p45 = por %p43, %p44
      %s47 = sadd.s32 %s46, 1
      %p50 = scmp.eq.s32.totalorder %s12, 1
      %p51 = scmp.ne.s32.totalorder %s46, %s48
      %p52 = scmp.eq.s32.totalorder %s12, 0
      %p53 = por %p51, %p52
      %p54 = scmp.ne.s32.totalorder %s46, %s48
      %p55 = scmp.eq.s32.totalorder %s17, 1
      %p56 = por %p54, %p55
      %p57 = scmp.ne.s32.totalorder %s48, %s49
      %p58 = scmp.eq.s32.totalorder %s17, 0
      %p59 = por %p57, %p58
      %p60 = scmp.ne.s32.totalorder %s48, %s49
      %p61 = scmp.eq.s32.totalorder %s18, 1
      %p62 = por %p60, %p61
      %p64 = scmp.ne.s32.totalorder %s49, %s63
      %p65 = scmp.eq.s32.totalorder %s18, 0
      %p66 = por %p64, %p65
      %s68 = sadd.s32 %s67, 1
      %p71 = scmp.eq.s32.totalorder %s12, 1
      %p72 = scmp.ne.s32.totalorder %s67, %s69
      %p73 = scmp.eq.s32.totalorder %s12, 0
      %p74 = por %p72, %p73
      %p75 = scmp.ne.s32.totalorder %s67, %s69
      %p76 = scmp.eq.s32.totalorder %s17, 1
      %p77 = por %p75, %p76
      %p78 = scmp.ne.s32.totalorder %s69, %s70
      %p79 = scmp.eq.s32.totalorder %s17, 0
      %p80 = por %p78, %p79
      %p81 = scmp.ne.s32.totalorder %s69, %s70
      %p82 = scmp.eq.s32.totalorder %s18, 1
      %p83 = por %p81, %p82
      %p85 = scmp.ne.s32.totalorder %s70, %s84
      %p86 = scmp.eq.s32.totalorder %s18, 0
      %p87 = por %p85, %p86
      %s88 = ssub.s32 %s12, %s19
      %p89 = scmp.eq.s32.totalorder %s88, 0
      %s91 = sadd.s32 %s90, 1
      %s92 = scalar_select %p89, %s90, %s91
      %p95 = pneg %p89
      %p96 = scmp.eq.s32.totalorder %s12, 1
      %p97 = por %p95, %p96
      %p98 = scmp.ne.s32.totalorder %s90, %s93
      %p99 = scmp.eq.s32.totalorder %s12, 0
      %p100 = por %p98, %p99
      %p101 = scmp.ne.s32.totalorder %s90, %s93
      %p102 = scmp.eq.s32.totalorder %s17, 1
      %p103 = por %p101, %p102
      %p104 = scmp.ne.s32.totalorder %s93, %s94
      %p105 = scmp.eq.s32.totalorder %s17, 0
      %p106 = por %p104, %p105
      %p107 = scmp.ne.s32.totalorder %s93, %s94
      %p108 = scmp.eq.s32.totalorder %s18, 1
      %p109 = por %p107, %p108
      %p111 = scmp.ne.s32.totalorder %s94, %s110
      %p112 = scmp.eq.s32.totalorder %s18, 0
      %p113 = por %p111, %p112
      %p114 = scmp.le.s32.totalorder 1, %s12
      %p115 = scmp.lt.s32.totalorder %s12, 3
      %p116 = pnand %p114, %p115
      %p117 = pneg %p116
      // Predicated region
      $region9: #{tpu_custom_call.1} parent=5 // pred_check
        _
      $region10: #{tpu_custom_call.1} parent=5 // pred_check_branch
        %119 = sbr.rel (%p116) target = $region12
      $region11: #{tpu_custom_call.1} parent=5 // pred_region
        %s120 = ssub.s32 %s12, 1
        // Predicated region
        $region13: #{tpu_custom_call.1} parent=11 // pred_check
          %p121 = pneg %p59
        $region14: #{tpu_custom_call.1} parent=11 // pred_check_branch
          %123 = sbr.rel (%p121) target = $region16
        $region15: #{tpu_custom_call.1} parent=11 // pred_region
          _
        $region16: #{tpu_custom_call.1} parent=11 // pred_fallthru
          _
        // Predicated region
        $region17: #{tpu_custom_call.1} parent=11 // pred_check
          %p124 = pneg %p80
        $region18: #{tpu_custom_call.1} parent=11 // pred_check_branch
          %126 = sbr.rel (%p124) target = $region20
        $region19: #{tpu_custom_call.1} parent=11 // pred_region
          _
        $region20: #{tpu_custom_call.1} parent=11 // pred_fallthru
          _
      $region12: #{tpu_custom_call.1} parent=5 // pred_fallthru
        _
      %p127 = scmp.lt.s32.totalorder %s12, 2
      // Predicated region
      $region21: #{tpu_custom_call.1} parent=5 // pred_check
        %p128 = pneg %p127
      $region22: #{tpu_custom_call.1} parent=5 // pred_check_branch
        %130 = sbr.rel (%p128) target = $region24
      $region23: #{tpu_custom_call.1} parent=5 // pred_region
        // Predicated region
        $region25: #{tpu_custom_call.1} parent=23 // pred_check
          %p131 = pneg %p32
        $region26: #{tpu_custom_call.1} parent=23 // pred_check_branch
          %133 = sbr.rel (%p131) target = $region28
        $region27: #{tpu_custom_call.1} parent=23 // pred_region
          %p134 = scmp.lt.s32.totalorder %s12, 1
          %s135 = scalar_select %p134, %s12, 1
          %s136 = smul.addr %s135, 36
          %s137 = smul.addr %s136, 4
          %s138 = scalar_lea.vmem %s0, %s137
        $region28: #{tpu_custom_call.1} parent=23 // pred_fallthru
          _
      $region24: #{tpu_custom_call.1} parent=5 // pred_fallthru
        _
      %p139 = scmp.le.s32.totalorder 1, %s12
      %p140 = scmp.lt.s32.totalorder %s12, 3
      %p141 = pnand %p139, %p140
      %p142 = pneg %p141
      // Predicated region
      $region29: #{tpu_custom_call.1} parent=5 // pred_check
        _
      $region30: #{tpu_custom_call.1} parent=5 // pred_check_branch
        %144 = sbr.rel (%p141) target = $region32
      $region31: #{tpu_custom_call.1} parent=5 // pred_region
        %s145 = ssub.s32 %s12, 1
        %p146 = scmp.lt.s32.totalorder %s17, 1
        %s147 = scalar_select %p146, %s17, 1
        %s148 = smul.addr %s147, 36
        %s149 = smul.addr %s148, 4
        %s150 = scalar_lea.vmem %s0, %s149
        %p151 = pneg %p38
        %p152 = pneg %p35
        %p153 = pneg %p59
        %p154 = pneg %p56
        %p155 = pneg %p80
        %p156 = pneg %p77
        %p157 = pneg %p106
        %p158 = pneg %p103
        %s159 = sand.u32 %s93, 1
        %s160 = scalar_lea.sflag [#allocation3], %s159
        %s161 = sand.u32 %s93, 1
        %s162 = smul.addr %s161, 128
        %s163 = scalar_lea.vmem [#allocation2], %s162
        %p164 = scmp.lt.s32.totalorder %s17, 1
        %s165 = scalar_select %p164, %s17, 1
        %s166 = smul.addr %s165, 36
        %s167 = smul.addr %s166, 4
        %s168 = scalar_lea.vmem %s0, %s167
        %v170 = vld [vmem:[%s168] sm:$0xf]
        %v171 = vld [vmem:[%s168 + $0x4] sm:$0xf]
        %v172 = vld [vmem:[%s168 + $0x8] sm:$0xf]
        %v173 = vld [vmem:[%s168 + $0xc] sm:$0xf]
        %v174 = vld [vmem:[%s168 + $0x10] sm:$0xf]
        %v175 = vld [vmem:[%s168 + $0x14] sm:$0xf]
        %v176 = vld [vmem:[%s168 + $0x18] sm:$0xf]
        %v177 = vld [vmem:[%s168 + $0x1c] sm:$0xf]
        %v178 = vld [vmem:[%s168 + $0x20] sm:$0xf]
        %v179 = vld [vmem:[%s168 + $0x24] sm:$0xf]
        %v180 = vld [vmem:[%s168 + $0x28] sm:$0xf]
        %v181 = vld [vmem:[%s168 + $0x2c] sm:$0xf]
        %v182 = vld [vmem:[%s168 + $0x30] sm:$0xf]
        %v183 = vld [vmem:[%s168 + $0x34] sm:$0xf]
        %v184 = vld [vmem:[%s168 + $0x38] sm:$0xf]
        %v185 = vld [vmem:[%s168 + $0x3c] sm:$0xf]
        %v186 = vld [vmem:[%s168 + $0x40] sm:$0xf]
        %v187 = vld [vmem:[%s168 + $0x44] sm:$0xf]
        %v188 = vld [vmem:[%s168 + $0x48] sm:$0xf]
        %v189 = vld [vmem:[%s168 + $0x4c] sm:$0xf]
        %v190 = vld [vmem:[%s168 + $0x50] sm:$0xf]
        %v191 = vld [vmem:[%s168 + $0x54] sm:$0xf]
        %v192 = vld [vmem:[%s168 + $0x58] sm:$0xf]
        %v193 = vld [vmem:[%s168 + $0x5c] sm:$0xf]
        %v194 = vld [vmem:[%s168 + $0x60] sm:$0xf]
        %v195 = vld [vmem:[%s168 + $0x64] sm:$0xf]
        %v196 = vld [vmem:[%s168 + $0x68] sm:$0xf]
        %v197 = vld [vmem:[%s168 + $0x6c] sm:$0xf]
        %v198 = vld [vmem:[%s168 + $0x70] sm:$0xf]
        %v199 = vld [vmem:[%s168 + $0x74] sm:$0xf]
        %v200 = vld [vmem:[%s168 + $0x78] sm:$0xf]
        %v201 = vld [vmem:[%s168 + $0x7c] sm:$0xf]
        %v202 = vld [vmem:[%s1] sm:$0xf]
        %v203 = vld [vmem:[%s1 + $0x4] sm:$0xf]
        %v204 = vld [vmem:[%s1 + $0x8] sm:$0xf]
        %v205 = vld [vmem:[%s1 + $0xc] sm:$0xf]
        %v206 = vld [vmem:[%s1 + $0x10] sm:$0xf]
        %v207 = vld [vmem:[%s1 + $0x14] sm:$0xf]
        %v208 = vld [vmem:[%s168 + $0x80] sm:$0xf]
        %v209 = vld [vmem:[%s168 + $0x84] sm:$0xf]
        %s210 = scalar_lea.vmem %s1, 24
        %v211 = vld [vmem:[%s210] sm:$0xf]
        %v212 = vld [vmem:[%s210 + $0x4] sm:$0xf]
        %v213 = vld [vmem:[%s210 + $0x8] sm:$0xf]
        %v214 = vld [vmem:[%s210 + $0xc] sm:$0xf]
        %v215 = vld [vmem:[%s210 + $0x10] sm:$0xf]
        %v216 = vld [vmem:[%s210 + $0x14] sm:$0xf]
        %v249 = vunpack.c.l.b16 %v172
        %v250 = vunpack.c.l.b16 %v173
        %v251 = vunpack.c.l.b16 %v174
        %v252 = vunpack.c.l.b16 %v175
        %v253 = vunpack.c.l.b16 %v176
        %v254 = vunpack.c.l.b16 %v177
        %v255 = vunpack.c.l.b16 %v178
        %v256 = vunpack.c.l.b16 %v179
        %v257 = vunpack.c.l.b16 %v180
        %v258 = vunpack.c.l.b16 %v181
        %v259 = vunpack.c.l.b16 %v182
        %v260 = vunpack.c.l.b16 %v183
        %v261 = vunpack.c.l.b16 %v184
        %v262 = vunpack.c.l.b16 %v185
        %v263 = vunpack.c.l.b16 %v186
        %v264 = vunpack.c.l.b16 %v187
        %v265 = vunpack.c.l.b16 %v188
        %v266 = vunpack.c.l.b16 %v189
        %v267 = vunpack.c.l.b16 %v190
        %v268 = vunpack.c.l.b16 %v191
        %v269 = vunpack.c.l.b16 %v192
        %v270 = vunpack.c.l.b16 %v193
        %v271 = vunpack.c.l.b16 %v194
        %v272 = vunpack.c.l.b16 %v195
        %v273 = vunpack.c.l.b16 %v196
        %v274 = vunpack.c.l.b16 %v197
        %v275 = vunpack.c.l.b16 %v198
        %v276 = vunpack.c.l.b16 %v199
        %v277 = vunpack.c.l.b16 %v200
        %v278 = vunpack.c.l.b16 %v201
        %v279 = vunpack.c.l.b16 %v208
        %v280 = vunpack.c.l.b16 %v209
        %v281 = vpack.c.b16 %v250, %v249
        %v282 = vpack.c.b16 %v252, %v251
        %v283 = vpack.c.b16 %v254, %v253
        %v284 = vpack.c.b16 %v256, %v255
        %v285 = vpack.c.b16 %v258, %v257
        %v286 = vpack.c.b16 %v260, %v259
        %v287 = vpack.c.b16 %v262, %v261
        %v288 = vpack.c.b16 %v264, %v263
        %v289 = vpack.c.b16 %v266, %v265
        %v290 = vpack.c.b16 %v268, %v267
        %v291 = vpack.c.b16 %v270, %v269
        %v292 = vpack.c.b16 %v272, %v271
        %v293 = vpack.c.b16 %v274, %v273
        %v294 = vpack.c.b16 %v276, %v275
        %v295 = vpack.c.b16 %v278, %v277
        %v296 = vpack.c.b16 %v280, %v279
        %v303 = vunpack.c.l.b16 %v211
        %v304 = vunpack.c.l.b16 %v212
        %v305 = vunpack.c.l.b16 %v213
        %v306 = vunpack.c.l.b16 %v214
        %v307 = vunpack.c.l.b16 %v215
        %v308 = vunpack.c.l.b16 %v216
        %v309 = vpack.c.b16 %v304, %v303
        %v310 = vpack.c.b16 %v306, %v305
        %v311 = vpack.c.b16 %v308, %v307
        %vm315 = vcmask 392192
        %v317 = vsel %vm315, %v281, 0
        %v320 = vsel %vm315, %v282, 0
        %v323 = vsel %vm315, %v283, 0
        %v326 = vsel %vm315, %v284, 0
        %v329 = vsel %vm315, %v285, 0
        %v332 = vsel %vm315, %v286, 0
        %v335 = vsel %vm315, %v287, 0
        %v338 = vsel %vm315, %v288, 0
        %v341 = vsel %vm315, %v289, 0
        %v344 = vsel %vm315, %v290, 0
        %v347 = vsel %vm315, %v291, 0
        %v350 = vsel %vm315, %v292, 0
        %v353 = vsel %vm315, %v293, 0
        %v356 = vsel %vm315, %v294, 0
        %v359 = vsel %vm315, %v295, 0
        %v362 = vsel %vm315, %v296, 0
        %364 = vmatprep.subr.bf16.mxu0 0
        %365 = vmatpush1.bf16.msra.mxu0 %v309
        %366 = vmatprep.subr.bf16.mxu0 0
        %367 = vmatpush1.bf16.msra.mxu0 %v310
        %368 = vmatprep.subr.bf16.mxu0 0
        %369 = vmatpush1.bf16.msra.mxu0 %v311
        %370 = vmatprep.subr.bf16.mxu0 0
        %371 = vmatpush1.bf16.msra.mxu0 0
        %372 = vmatprep.subr.bf16.mxu0 0
        %373 = vmatpush1.bf16.msra.mxu0 0
        %374 = vmatprep.subr.bf16.mxu0 0
        %375 = vmatpush1.bf16.msra.mxu0 0
        %376 = vmatprep.subr.bf16.mxu0 0
        %377 = vmatpush1.bf16.msra.mxu0 0
        %378 = vmatprep.subr.bf16.mxu0 0
        %379 = vmatpush1.bf16.msra.mxu0 0
        %380 = vmatprep.subr.bf16.mxu0 0
        %381 = vmatpush1.bf16.msra.mxu0 0
        %382 = vmatprep.subr.bf16.mxu0 0
        %383 = vmatpush1.bf16.msra.mxu0 0
        %384 = vmatprep.subr.bf16.mxu0 0
        %385 = vmatpush1.bf16.msra.mxu0 0
        %386 = vmatprep.subr.bf16.mxu0 0
        %387 = vmatpush1.bf16.msra.mxu0 0
        %388 = vmatprep.subr.bf16.mxu0 0
        %389 = vmatpush1.bf16.msra.mxu0 0
        %390 = vmatprep.subr.bf16.mxu0 0
        %391 = vmatpush1.bf16.msra.mxu0 0
        %392 = vmatprep.subr.bf16.mxu0 0
        %393 = vmatpush1.bf16.msra.mxu0 0
        %394 = vmatprep.subr.bf16.mxu0 0
        %395 = vmatpush1.bf16.msra.mxu0 0
        %396 = vmatprep.mubr.bf16.mxu0 0
        %397 = vmatmul.mubr.bf16.gmra.mrb[0].mxu0 %v317
        %v398 = vpop.f32.mrb[0].mxu0
        %v399 = vadd.f32 0.0, %v398
        %v400 = vpop.f32.mrb[0].mxu0
        %v401 = vpop.f32.mrb[0].mxu0
        %v402 = vadd.f32 0.0, %v401
        %v403 = vpop.f32.mrb[0].mxu0
        %404 = vmatprep.mubr.bf16.mxu0 0
        %405 = vmatmul.mubr.bf16.gmra.mrb[0].mxu0 %v320
        %v406 = vpop.f32.mrb[0].mxu0
        %v407 = vadd.f32 0.0, %v406
        %v408 = vpop.f32.mrb[0].mxu0
        %v409 = vpop.f32.mrb[0].mxu0
        %v410 = vadd.f32 0.0, %v409
        %v411 = vpop.f32.mrb[0].mxu0
        %412 = vmatprep.mubr.bf16.mxu0 0
        %413 = vmatmul.mubr.bf16.gmra.mrb[0].mxu0 %v323
        %v414 = vpop.f32.mrb[0].mxu0
        %v415 = vadd.f32 0.0, %v414
        %v416 = vpop.f32.mrb[0].mxu0
        %v417 = vpop.f32.mrb[0].mxu0
        %v418 = vadd.f32 0.0, %v417
        %v419 = vpop.f32.mrb[0].mxu0
        %420 = vmatprep.mubr.bf16.mxu0 0
        %421 = vmatmul.mubr.bf16.gmra.mrb[0].mxu0 %v326
        %v422 = vpop.f32.mrb[0].mxu0
        %v423 = vadd.f32 0.0, %v422
        %v424 = vpop.f32.mrb[0].mxu0
        %v425 = vpop.f32.mrb[0].mxu0
        %v426 = vadd.f32 0.0, %v425
        %v427 = vpop.f32.mrb[0].mxu0
        %428 = vmatprep.mubr.bf16.mxu0 0
        %429 = vmatmul.mubr.bf16.gmra.mrb[0].mxu0 %v329
        %v430 = vpop.f32.mrb[0].mxu0
        %v431 = vadd.f32 0.0, %v430
        %v432 = vpop.f32.mrb[0].mxu0
        %v433 = vpop.f32.mrb[0].mxu0
        %v434 = vadd.f32 0.0, %v433
        %v435 = vpop.f32.mrb[0].mxu0
        %436 = vmatprep.mubr.bf16.mxu0 0
        %437 = vmatmul.mubr.bf16.gmra.mrb[0].mxu0 %v332
        %v438 = vpop.f32.mrb[0].mxu0
        %v439 = vadd.f32 0.0, %v438
        %v440 = vpop.f32.mrb[0].mxu0
        %v441 = vpop.f32.mrb[0].mxu0
        %v442 = vadd.f32 0.0, %v441
        %v443 = vpop.f32.mrb[0].mxu0
        %444 = vmatprep.mubr.bf16.mxu0 0
        %445 = vmatmul.mubr.bf16.gmra.mrb[0].mxu0 %v335
        %v446 = vpop.f32.mrb[0].mxu0
        %v447 = vadd.f32 0.0, %v446
        %v448 = vpop.f32.mrb[0].mxu0
        %v449 = vpop.f32.mrb[0].mxu0
        %v450 = vadd.f32 0.0, %v449
        %v451 = vpop.f32.mrb[0].mxu0
        %452 = vmatprep.mubr.bf16.mxu0 0
        %453 = vmatmul.mubr.bf16.gmra.mrb[0].mxu0 %v338
        %v454 = vpop.f32.mrb[0].mxu0
        %v455 = vadd.f32 0.0, %v454
        %v456 = vpop.f32.mrb[0].mxu0
        %v457 = vpop.f32.mrb[0].mxu0
        %v458 = vadd.f32 0.0, %v457
        %v459 = vpop.f32.mrb[0].mxu0
        %460 = vmatprep.mubr.bf16.mxu0 0
        %461 = vmatmul.mubr.bf16.gmra.mrb[0].mxu0 %v341
        %v462 = vpop.f32.mrb[0].mxu0
        %v463 = vadd.f32 0.0, %v462
        %v464 = vpop.f32.mrb[0].mxu0
        %v465 = vpop.f32.mrb[0].mxu0
        %v466 = vadd.f32 0.0, %v465
        %v467 = vpop.f32.mrb[0].mxu0
        %468 = vmatprep.mubr.bf16.mxu0 0
        %469 = vmatmul.mubr.bf16.gmra.mrb[0].mxu0 %v344
        %v470 = vpop.f32.mrb[0].mxu0
        %v471 = vadd.f32 0.0, %v470
        %v472 = vpop.f32.mrb[0].mxu0
        %v473 = vpop.f32.mrb[0].mxu0
        %v474 = vadd.f32 0.0, %v473
        %v475 = vpop.f32.mrb[0].mxu0
        %476 = vmatprep.mubr.bf16.mxu0 0
        %477 = vmatmul.mubr.bf16.gmra.mrb[0].mxu0 %v347
        %v478 = vpop.f32.mrb[0].mxu0
        %v479 = vadd.f32 0.0, %v478
        %v480 = vpop.f32.mrb[0].mxu0
        %v481 = vpop.f32.mrb[0].mxu0
        %v482 = vadd.f32 0.0, %v481
        %v483 = vpop.f32.mrb[0].mxu0
        %484 = vmatprep.mubr.bf16.mxu0 0
        %485 = vmatmul.mubr.bf16.gmra.mrb[0].mxu0 %v350
        %v486 = vpop.f32.mrb[0].mxu0
        %v487 = vadd.f32 0.0, %v486
        %v488 = vpop.f32.mrb[0].mxu0
        %v489 = vpop.f32.mrb[0].mxu0
        %v490 = vadd.f32 0.0, %v489
        %v491 = vpop.f32.mrb[0].mxu0
        %492 = vmatprep.mubr.bf16.mxu0 0
        %493 = vmatmul.mubr.bf16.gmra.mrb[0].mxu0 %v353
        %v494 = vpop.f32.mrb[0].mxu0
        %v495 = vadd.f32 0.0, %v494
        %v496 = vpop.f32.mrb[0].mxu0
        %v497 = vpop.f32.mrb[0].mxu0
        %v498 = vadd.f32 0.0, %v497
        %v499 = vpop.f32.mrb[0].mxu0
        %500 = vmatprep.mubr.bf16.mxu0 0
        %501 = vmatmul.mubr.bf16.gmra.mrb[0].mxu0 %v356
        %v502 = vpop.f32.mrb[0].mxu0
        %v503 = vadd.f32 0.0, %v502
        %v504 = vpop.f32.mrb[0].mxu0
        %v505 = vpop.f32.mrb[0].mxu0
        %v506 = vadd.f32 0.0, %v505
        %v507 = vpop.f32.mrb[0].mxu0
        %508 = vmatprep.mubr.bf16.mxu0 0
        %509 = vmatmul.mubr.bf16.gmra.mrb[0].mxu0 %v359
        %v510 = vpop.f32.mrb[0].mxu0
        %v511 = vadd.f32 0.0, %v510
        %v512 = vpop.f32.mrb[0].mxu0
        %v513 = vpop.f32.mrb[0].mxu0
        %v514 = vadd.f32 0.0, %v513
        %v515 = vpop.f32.mrb[0].mxu0
        %516 = vmatprep.mubr.bf16.mxu0 0
        %517 = vmatmul.mubr.bf16.gmra.mrb[0].mxu0 %v362
        %v518 = vpop.f32.mrb[0].mxu0
        %v519 = vadd.f32 0.0, %v518
        %v520 = vpop.f32.mrb[0].mxu0
        %v521 = vpop.f32.mrb[0].mxu0
        %v522 = vadd.f32 0.0, %v521
        %v523 = vpop.f32.mrb[0].mxu0
        %524 = vdwg.mxu0
        %v527 = vunpack.c.l.b16 %v170
        %v528 = vunpack.c.l.b16 %v171
        %v529 = vpack.c.b16 %v528, %v527
        %v536 = vunpack.c.l.b16 %v202
        %v537 = vunpack.c.l.b16 %v203
        %v538 = vunpack.c.l.b16 %v204
        %v539 = vunpack.c.l.b16 %v205
        %v540 = vunpack.c.l.b16 %v206
        %v541 = vunpack.c.l.b16 %v207
        %v542 = vpack.c.b16 %v537, %v536
        %v543 = vpack.c.b16 %v539, %v538
        %v544 = vpack.c.b16 %v541, %v540
        %v549 = vsel %vm315, %v529, 0
        %551 = vmatprep.subr.bf16.mxu0 0
        %552 = vmatpush1.bf16.msra.mxu0 %v542
        %553 = vmatprep.subr.bf16.mxu0 0
        %554 = vmatpush1.bf16.msra.mxu0 %v543
        %555 = vmatprep.subr.bf16.mxu0 0
        %556 = vmatpush1.bf16.msra.mxu0 %v544
        %557 = vmatprep.subr.bf16.mxu0 0
        %558 = vmatpush1.bf16.msra.mxu0 0
        %559 = vmatprep.subr.bf16.mxu0 0
        %560 = vmatpush1.bf16.msra.mxu0 0
        %561 = vmatprep.subr.bf16.mxu0 0
        %562 = vmatpush1.bf16.msra.mxu0 0
        %563 = vmatprep.subr.bf16.mxu0 0
        %564 = vmatpush1.bf16.msra.mxu0 0
        %565 = vmatprep.subr.bf16.mxu0 0
        %566 = vmatpush1.bf16.msra.mxu0 0
        %567 = vmatprep.subr.bf16.mxu0 0
        %568 = vmatpush1.bf16.msra.mxu0 0
        %569 = vmatprep.subr.bf16.mxu0 0
        %570 = vmatpush1.bf16.msra.mxu0 0
        %571 = vmatprep.subr.bf16.mxu0 0
        %572 = vmatpush1.bf16.msra.mxu0 0
        %573 = vmatprep.subr.bf16.mxu0 0
        %574 = vmatpush1.bf16.msra.mxu0 0
        %575 = vmatprep.subr.bf16.mxu0 0
        %576 = vmatpush1.bf16.msra.mxu0 0
        %577 = vmatprep.subr.bf16.mxu0 0
        %578 = vmatpush1.bf16.msra.mxu0 0
        %579 = vmatprep.subr.bf16.mxu0 0
        %580 = vmatpush1.bf16.msra.mxu0 0
        %581 = vmatprep.subr.bf16.mxu0 0
        %582 = vmatpush1.bf16.msra.mxu0 0
        %583 = vmatprep.mubr.bf16.mxu0 0
        %584 = vmatmul.mubr.bf16.gmra.mrb[0].mxu0 %v549
        %v585 = vpop.f32.mrb[0].mxu0
        %v586 = vadd.f32 %v399, %v585
        %v587 = vpop.f32.mrb[0].mxu0
        %v588 = vpop.f32.mrb[0].mxu0
        %v589 = vadd.f32 %v402, %v588
        %v590 = vpop.f32.mrb[0].mxu0
        %591 = vmatprep.mubr.bf16.mxu0 0
        %592 = vmatmul.mubr.bf16.gmra.mrb[0].mxu0 %v317
        %v593 = vpop.f32.mrb[0].mxu0
        %v594 = vadd.f32 %v407, %v593
        %v595 = vpop.f32.mrb[0].mxu0
        %v596 = vpop.f32.mrb[0].mxu0
        %v597 = vadd.f32 %v410, %v596
        %v598 = vpop.f32.mrb[0].mxu0
        %599 = vmatprep.mubr.bf16.mxu0 0
        %600 = vmatmul.mubr.bf16.gmra.mrb[0].mxu0 %v320
        %v601 = vpop.f32.mrb[0].mxu0
        %v602 = vadd.f32 %v415, %v601
        %v603 = vpop.f32.mrb[0].mxu0
        %v604 = vpop.f32.mrb[0].mxu0
        %v605 = vadd.f32 %v418, %v604
        %v606 = vpop.f32.mrb[0].mxu0
        %607 = vmatprep.mubr.bf16.mxu0 0
        %608 = vmatmul.mubr.bf16.gmra.mrb[0].mxu0 %v323
        %v609 = vpop.f32.mrb[0].mxu0
        %v610 = vadd.f32 %v423, %v609
        %v611 = vpop.f32.mrb[0].mxu0
        %v612 = vpop.f32.mrb[0].mxu0
        %v613 = vadd.f32 %v426, %v612
        %v614 = vpop.f32.mrb[0].mxu0
        %615 = vmatprep.mubr.bf16.mxu0 0
        %616 = vmatmul.mubr.bf16.gmra.mrb[0].mxu0 %v326
        %v617 = vpop.f32.mrb[0].mxu0
        %v618 = vadd.f32 %v431, %v617
        %v619 = vpop.f32.mrb[0].mxu0
        %v620 = vpop.f32.mrb[0].mxu0
        %v621 = vadd.f32 %v434, %v620
        %v622 = vpop.f32.mrb[0].mxu0
        %623 = vmatprep.mubr.bf16.mxu0 0
        %624 = vmatmul.mubr.bf16.gmra.mrb[0].mxu0 %v329
        %v625 = vpop.f32.mrb[0].mxu0
        %v626 = vadd.f32 %v439, %v625
        %v627 = vpop.f32.mrb[0].mxu0
        %v628 = vpop.f32.mrb[0].mxu0
        %v629 = vadd.f32 %v442, %v628
        %v630 = vpop.f32.mrb[0].mxu0
        %631 = vmatprep.mubr.bf16.mxu0 0
        %632 = vmatmul.mubr.bf16.gmra.mrb[0].mxu0 %v332
        %v633 = vpop.f32.mrb[0].mxu0
        %v634 = vadd.f32 %v447, %v633
        %v635 = vpop.f32.mrb[0].mxu0
        %v636 = vpop.f32.mrb[0].mxu0
        %v637 = vadd.f32 %v450, %v636
        %v638 = vpop.f32.mrb[0].mxu0
        %639 = vmatprep.mubr.bf16.mxu0 0
        %640 = vmatmul.mubr.bf16.gmra.mrb[0].mxu0 %v335
        %v641 = vpop.f32.mrb[0].mxu0
        %v642 = vadd.f32 %v455, %v641
        %v643 = vpop.f32.mrb[0].mxu0
        %v644 = vpop.f32.mrb[0].mxu0
        %v645 = vadd.f32 %v458, %v644
        %v646 = vpop.f32.mrb[0].mxu0
        %647 = vmatprep.mubr.bf16.mxu0 0
        %648 = vmatmul.mubr.bf16.gmra.mrb[0].mxu0 %v338
        %v649 = vpop.f32.mrb[0].mxu0
        %v650 = vadd.f32 %v463, %v649
        %v651 = vpop.f32.mrb[0].mxu0
        %v652 = vpop.f32.mrb[0].mxu0
        %v653 = vadd.f32 %v466, %v652
        %v654 = vpop.f32.mrb[0].mxu0
        %655 = vmatprep.mubr.bf16.mxu0 0
        %656 = vmatmul.mubr.bf16.gmra.mrb[0].mxu0 %v341
        %v657 = vpop.f32.mrb[0].mxu0
        %v658 = vadd.f32 %v471, %v657
        %v659 = vpop.f32.mrb[0].mxu0
        %v660 = vpop.f32.mrb[0].mxu0
        %v661 = vadd.f32 %v474, %v660
        %v662 = vpop.f32.mrb[0].mxu0
        %663 = vmatprep.mubr.bf16.mxu0 0
        %664 = vmatmul.mubr.bf16.gmra.mrb[0].mxu0 %v344
        %v665 = vpop.f32.mrb[0].mxu0
        %v666 = vadd.f32 %v479, %v665
        %v667 = vpop.f32.mrb[0].mxu0
        %v668 = vpop.f32.mrb[0].mxu0
        %v669 = vadd.f32 %v482, %v668
        %v670 = vpop.f32.mrb[0].mxu0
        %671 = vmatprep.mubr.bf16.mxu0 0
        %672 = vmatmul.mubr.bf16.gmra.mrb[0].mxu0 %v347
        %v673 = vpop.f32.mrb[0].mxu0
        %v674 = vadd.f32 %v487, %v673
        %v675 = vpop.f32.mrb[0].mxu0
        %v676 = vpop.f32.mrb[0].mxu0
        %v677 = vadd.f32 %v490, %v676
        %v678 = vpop.f32.mrb[0].mxu0
        %679 = vmatprep.mubr.bf16.mxu0 0
        %680 = vmatmul.mubr.bf16.gmra.mrb[0].mxu0 %v350
        %v681 = vpop.f32.mrb[0].mxu0
        %v682 = vadd.f32 %v495, %v681
        %v683 = vpop.f32.mrb[0].mxu0
        %v684 = vpop.f32.mrb[0].mxu0
        %v685 = vadd.f32 %v498, %v684
        %v686 = vpop.f32.mrb[0].mxu0
        %687 = vmatprep.mubr.bf16.mxu0 0
        %688 = vmatmul.mubr.bf16.gmra.mrb[0].mxu0 %v353
        %v689 = vpop.f32.mrb[0].mxu0
        %v690 = vadd.f32 %v503, %v689
        %v691 = vpop.f32.mrb[0].mxu0
        %v692 = vpop.f32.mrb[0].mxu0
        %v693 = vadd.f32 %v506, %v692
        %v694 = vpop.f32.mrb[0].mxu0
        %695 = vmatprep.mubr.bf16.mxu0 0
        %696 = vmatmul.mubr.bf16.gmra.mrb[0].mxu0 %v356
        %v697 = vpop.f32.mrb[0].mxu0
        %v698 = vadd.f32 %v511, %v697
        %v699 = vpop.f32.mrb[0].mxu0
        %v700 = vpop.f32.mrb[0].mxu0
        %v701 = vadd.f32 %v514, %v700
        %v702 = vpop.f32.mrb[0].mxu0
        %703 = vmatprep.mubr.bf16.mxu0 0
        %704 = vmatmul.mubr.bf16.gmra.mrb[0].mxu0 %v359
        %v705 = vpop.f32.mrb[0].mxu0
        %v706 = vadd.f32 %v519, %v705
        %v707 = vpop.f32.mrb[0].mxu0
        %v708 = vpop.f32.mrb[0].mxu0
        %v709 = vadd.f32 %v522, %v708
        %v710 = vpop.f32.mrb[0].mxu0
        %711 = vdwg.mxu0
        %v712 = vld [vmem:[%s168 + $0x10] sm:$0xf]
        %v713 = vld [vmem:[%s168 + $0x14] sm:$0xf]
        %v714 = vld [vmem:[%s168 + $0x18] sm:$0xf]
        %v715 = vld [vmem:[%s168 + $0x1c] sm:$0xf]
        %v716 = vld [vmem:[%s168 + $0x20] sm:$0xf]
        %v717 = vld [vmem:[%s168 + $0x24] sm:$0xf]
        %v718 = vld [vmem:[%s168 + $0x28] sm:$0xf]
        %v719 = vld [vmem:[%s168 + $0x2c] sm:$0xf]
        %v720 = vld [vmem:[%s168 + $0x30] sm:$0xf]
        %v721 = vld [vmem:[%s168 + $0x34] sm:$0xf]
        %v722 = vld [vmem:[%s168 + $0x38] sm:$0xf]
        %v723 = vld [vmem:[%s168 + $0x3c] sm:$0xf]
        %v724 = vld [vmem:[%s168 + $0x40] sm:$0xf]
        %v725 = vld [vmem:[%s168 + $0x44] sm:$0xf]
        %v726 = vld [vmem:[%s168 + $0x48] sm:$0xf]
        %v727 = vld [vmem:[%s168 + $0x4c] sm:$0xf]
        %v728 = vld [vmem:[%s168 + $0x50] sm:$0xf]
        %v729 = vld [vmem:[%s168 + $0x54] sm:$0xf]
        %v730 = vld [vmem:[%s168 + $0x58] sm:$0xf]
        %v731 = vld [vmem:[%s168 + $0x5c] sm:$0xf]
        %v732 = vld [vmem:[%s168 + $0x60] sm:$0xf]
        %v733 = vld [vmem:[%s168 + $0x64] sm:$0xf]
        %v734 = vld [vmem:[%s168 + $0x68] sm:$0xf]
        %v735 = vld [vmem:[%s168 + $0x6c] sm:$0xf]
        %v736 = vld [vmem:[%s168 + $0x70] sm:$0xf]
        %v737 = vld [vmem:[%s168 + $0x74] sm:$0xf]
        %v738 = vld [vmem:[%s168 + $0x78] sm:$0xf]
        %v739 = vld [vmem:[%s168 + $0x7c] sm:$0xf]
        %v740 = vld [vmem:[%s168 + $0x80] sm:$0xf]
        %v741 = vld [vmem:[%s168 + $0x84] sm:$0xf]
        %v742 = vld [vmem:[%s168 + $0x88] sm:$0xf]
        %v743 = vld [vmem:[%s168 + $0x8c] sm:$0xf]
        %s744 = scalar_lea.vmem %s1, 48
        %v745 = vld [vmem:[%s744] sm:$0xf]
        %v746 = vld [vmem:[%s744 + $0x4] sm:$0xf]
        %v747 = vld [vmem:[%s744 + $0x8] sm:$0xf]
        %v748 = vld [vmem:[%s744 + $0xc] sm:$0xf]
        %v749 = vld [vmem:[%s744 + $0x10] sm:$0xf]
        %v750 = vld [vmem:[%s744 + $0x14] sm:$0xf]
        %v783 = vunpack.c.l.b16 %v712
        %v784 = vunpack.c.l.b16 %v713
        %v785 = vunpack.c.l.b16 %v714
        %v786 = vunpack.c.l.b16 %v715
        %v787 = vunpack.c.l.b16 %v716
        %v788 = vunpack.c.l.b16 %v717
        %v789 = vunpack.c.l.b16 %v718
        %v790 = vunpack.c.l.b16 %v719
        %v791 = vunpack.c.l.b16 %v720
        %v792 = vunpack.c.l.b16 %v721
        %v793 = vunpack.c.l.b16 %v722
        %v794 = vunpack.c.l.b16 %v723
        %v795 = vunpack.c.l.b16 %v724
        %v796 = vunpack.c.l.b16 %v725
        %v797 = vunpack.c.l.b16 %v726
        %v798 = vunpack.c.l.b16 %v727
        %v799 = vunpack.c.l.b16 %v728
        %v800 = vunpack.c.l.b16 %v729
        %v801 = vunpack.c.l.b16 %v730
        %v802 = vunpack.c.l.b16 %v731
        %v803 = vunpack.c.l.b16 %v732
        %v804 = vunpack.c.l.b16 %v733
        %v805 = vunpack.c.l.b16 %v734
        %v806 = vunpack.c.l.b16 %v735
        %v807 = vunpack.c.l.b16 %v736
        %v808 = vunpack.c.l.b16 %v737
        %v809 = vunpack.c.l.b16 %v738
        %v810 = vunpack.c.l.b16 %v739
        %v811 = vunpack.c.l.b16 %v740
        %v812 = vunpack.c.l.b16 %v741
        %v813 = vunpack.c.l.b16 %v742
        %v814 = vunpack.c.l.b16 %v743
        %v815 = vpack.c.b16 %v784, %v783
        %v816 = vpack.c.b16 %v786, %v785
        %v817 = vpack.c.b16 %v788, %v787
        %v818 = vpack.c.b16 %v790, %v789
        %v819 = vpack.c.b16 %v792, %v791
        %v820 = vpack.c.b16 %v794, %v793
        %v821 = vpack.c.b16 %v796, %v795
        %v822 = vpack.c.b16 %v798, %v797
        %v823 = vpack.c.b16 %v800, %v799
        %v824 = vpack.c.b16 %v802, %v801
        %v825 = vpack.c.b16 %v804, %v803
        %v826 = vpack.c.b16 %v806, %v805
        %v827 = vpack.c.b16 %v808, %v807
        %v828 = vpack.c.b16 %v810, %v809
        %v829 = vpack.c.b16 %v812, %v811
        %v830 = vpack.c.b16 %v814, %v813
        %v837 = vunpack.c.l.b16 %v745
        %v838 = vunpack.c.l.b16 %v746
        %v839 = vunpack.c.l.b16 %v747
        %v840 = vunpack.c.l.b16 %v748
        %v841 = vunpack.c.l.b16 %v749
        %v842 = vunpack.c.l.b16 %v750
        %v843 = vpack.c.b16 %v838, %v837
        %v844 = vpack.c.b16 %v840, %v839
        %v845 = vpack.c.b16 %v842, %v841
        %v850 = vsel %vm315, %v815, 0
        %v853 = vsel %vm315, %v816, 0
        %v856 = vsel %vm315, %v817, 0
        %v859 = vsel %vm315, %v818, 0
        %v862 = vsel %vm315, %v819, 0
        %v865 = vsel %vm315, %v820, 0
        %v868 = vsel %vm315, %v821, 0
        %v871 = vsel %vm315, %v822, 0
        %v874 = vsel %vm315, %v823, 0
        %v877 = vsel %vm315, %v824, 0
        %v880 = vsel %vm315, %v825, 0
        %v883 = vsel %vm315, %v826, 0
        %v886 = vsel %vm315, %v827, 0
        %v889 = vsel %vm315, %v828, 0
        %v892 = vsel %vm315, %v829, 0
        %v895 = vsel %vm315, %v830, 0
        %897 = vmatprep.subr.bf16.mxu0 0
        %898 = vmatpush1.bf16.msra.mxu0 %v843
        %899 = vmatprep.subr.bf16.mxu0 0
        %900 = vmatpush1.bf16.msra.mxu0 %v844
        %901 = vmatprep.subr.bf16.mxu0 0
        %902 = vmatpush1.bf16.msra.mxu0 %v845
        %903 = vmatprep.subr.bf16.mxu0 0
        %904 = vmatpush1.bf16.msra.mxu0 0
        %905 = vmatprep.subr.bf16.mxu0 0
        %906 = vmatpush1.bf16.msra.mxu0 0
        %907 = vmatprep.subr.bf16.mxu0 0
        %908 = vmatpush1.bf16.msra.mxu0 0
        %909 = vmatprep.subr.bf16.mxu0 0
        %910 = vmatpush1.bf16.msra.mxu0 0
        %911 = vmatprep.subr.bf16.mxu0 0
        %912 = vmatpush1.bf16.msra.mxu0 0
        %913 = vmatprep.subr.bf16.mxu0 0
        %914 = vmatpush1.bf16.msra.mxu0 0
        %915 = vmatprep.subr.bf16.mxu0 0
        %916 = vmatpush1.bf16.msra.mxu0 0
        %917 = vmatprep.subr.bf16.mxu0 0
        %918 = vmatpush1.bf16.msra.mxu0 0
        %919 = vmatprep.subr.bf16.mxu0 0
        %920 = vmatpush1.bf16.msra.mxu0 0
        %921 = vmatprep.subr.bf16.mxu0 0
        %922 = vmatpush1.bf16.msra.mxu0 0
        %923 = vmatprep.subr.bf16.mxu0 0
        %924 = vmatpush1.bf16.msra.mxu0 0
        %925 = vmatprep.subr.bf16.mxu0 0
        %926 = vmatpush1.bf16.msra.mxu0 0
        %927 = vmatprep.subr.bf16.mxu0 0
        %928 = vmatpush1.bf16.msra.mxu0 0
        %929 = vmatprep.mubr.bf16.mxu0 0
        %930 = vmatmul.mubr.bf16.gmra.mrb[0].mxu0 %v850
        %v931 = vpop.f32.mrb[0].mxu0
        %v932 = vadd.f32 0.0, %v931
        %v933 = vpop.f32.mrb[0].mxu0
        %v934 = vpop.f32.mrb[0].mxu0
        %v935 = vadd.f32 0.0, %v934
        %v936 = vpop.f32.mrb[0].mxu0
        %937 = vmatprep.mubr.bf16.mxu0 0
        %938 = vmatmul.mubr.bf16.gmra.mrb[0].mxu0 %v853
        %v939 = vpop.f32.mrb[0].mxu0
        %v940 = vadd.f32 0.0, %v939
        %v941 = vpop.f32.mrb[0].mxu0
        %v942 = vpop.f32.mrb[0].mxu0
        %v943 = vadd.f32 0.0, %v942
        %v944 = vpop.f32.mrb[0].mxu0
        %945 = vmatprep.mubr.bf16.mxu0 0
        %946 = vmatmul.mubr.bf16.gmra.mrb[0].mxu0 %v856
        %v947 = vpop.f32.mrb[0].mxu0
        %v948 = vadd.f32 0.0, %v947
        %v949 = vpop.f32.mrb[0].mxu0
        %v950 = vpop.f32.mrb[0].mxu0
        %v951 = vadd.f32 0.0, %v950
        %v952 = vpop.f32.mrb[0].mxu0
        %953 = vmatprep.mubr.bf16.mxu0 0
        %954 = vmatmul.mubr.bf16.gmra.mrb[0].mxu0 %v859
        %v955 = vpop.f32.mrb[0].mxu0
        %v956 = vadd.f32 0.0, %v955
        %v957 = vpop.f32.mrb[0].mxu0
        %v958 = vpop.f32.mrb[0].mxu0
        %v959 = vadd.f32 0.0, %v958
        %v960 = vpop.f32.mrb[0].mxu0
        %961 = vmatprep.mubr.bf16.mxu0 0
        %962 = vmatmul.mubr.bf16.gmra.mrb[0].mxu0 %v862
        %v963 = vpop.f32.mrb[0].mxu0
        %v964 = vadd.f32 0.0, %v963
        %v965 = vpop.f32.mrb[0].mxu0
        %v966 = vpop.f32.mrb[0].mxu0
        %v967 = vadd.f32 0.0, %v966
        %v968 = vpop.f32.mrb[0].mxu0
        %969 = vmatprep.mubr.bf16.mxu0 0
        %970 = vmatmul.mubr.bf16.gmra.mrb[0].mxu0 %v865
        %v971 = vpop.f32.mrb[0].mxu0
        %v972 = vadd.f32 0.0, %v971
        %v973 = vpop.f32.mrb[0].mxu0
        %v974 = vpop.f32.mrb[0].mxu0
        %v975 = vadd.f32 0.0, %v974
        %v976 = vpop.f32.mrb[0].mxu0
        %977 = vmatprep.mubr.bf16.mxu0 0
        %978 = vmatmul.mubr.bf16.gmra.mrb[0].mxu0 %v868
        %v979 = vpop.f32.mrb[0].mxu0
        %v980 = vadd.f32 0.0, %v979
        %v981 = vpop.f32.mrb[0].mxu0
        %v982 = vpop.f32.mrb[0].mxu0
        %v983 = vadd.f32 0.0, %v982
        %v984 = vpop.f32.mrb[0].mxu0
        %985 = vmatprep.mubr.bf16.mxu0 0
        %986 = vmatmul.mubr.bf16.gmra.mrb[0].mxu0 %v871
        %v987 = vpop.f32.mrb[0].mxu0
        %v988 = vadd.f32 0.0, %v987
        %v989 = vpop.f32.mrb[0].mxu0
        %v990 = vpop.f32.mrb[0].mxu0
        %v991 = vadd.f32 0.0, %v990
        %v992 = vpop.f32.mrb[0].mxu0
        %993 = vmatprep.mubr.bf16.mxu0 0
        %994 = vmatmul.mubr.bf16.gmra.mrb[0].mxu0 %v874
        %v995 = vpop.f32.mrb[0].mxu0
        %v996 = vadd.f32 0.0, %v995
        %v997 = vpop.f32.mrb[0].mxu0
        %v998 = vpop.f32.mrb[0].mxu0
        %v999 = vadd.f32 0.0, %v998
        %v1000 = vpop.f32.mrb[0].mxu0
        %1001 = vmatprep.mubr.bf16.mxu0 0
        %1002 = vmatmul.mubr.bf16.gmra.mrb[0].mxu0 %v877
        %v1003 = vpop.f32.mrb[0].mxu0
        %v1004 = vadd.f32 0.0, %v1003
        %v1005 = vpop.f32.mrb[0].mxu0
        %v1006 = vpop.f32.mrb[0].mxu0
        %v1007 = vadd.f32 0.0, %v1006
        %v1008 = vpop.f32.mrb[0].mxu0
        %1009 = vmatprep.mubr.bf16.mxu0 0
        %1010 = vmatmul.mubr.bf16.gmra.mrb[0].mxu0 %v880
        %v1011 = vpop.f32.mrb[0].mxu0
        %v1012 = vadd.f32 0.0, %v1011
        %v1013 = vpop.f32.mrb[0].mxu0
        %v1014 = vpop.f32.mrb[0].mxu0
        %v1015 = vadd.f32 0.0, %v1014
        %v1016 = vpop.f32.mrb[0].mxu0
        %1017 = vmatprep.mubr.bf16.mxu0 0
        %1018 = vmatmul.mubr.bf16.gmra.mrb[0].mxu0 %v883
        %v1019 = vpop.f32.mrb[0].mxu0
        %v1020 = vadd.f32 0.0, %v1019
        %v1021 = vpop.f32.mrb[0].mxu0
        %v1022 = vpop.f32.mrb[0].mxu0
        %v1023 = vadd.f32 0.0, %v1022
        %v1024 = vpop.f32.mrb[0].mxu0
        %1025 = vmatprep.mubr.bf16.mxu0 0
        %1026 = vmatmul.mubr.bf16.gmra.mrb[0].mxu0 %v886
        %v1027 = vpop.f32.mrb[0].mxu0
        %v1028 = vadd.f32 0.0, %v1027
        %v1029 = vpop.f32.mrb[0].mxu0
        %v1030 = vpop.f32.mrb[0].mxu0
        %v1031 = vadd.f32 0.0, %v1030
        %v1032 = vpop.f32.mrb[0].mxu0
        %1033 = vmatprep.mubr.bf16.mxu0 0
        %1034 = vmatmul.mubr.bf16.gmra.mrb[0].mxu0 %v889
        %v1035 = vpop.f32.mrb[0].mxu0
        %v1036 = vadd.f32 0.0, %v1035
        %v1037 = vpop.f32.mrb[0].mxu0
        %v1038 = vpop.f32.mrb[0].mxu0
        %v1039 = vadd.f32 0.0, %v1038
        %v1040 = vpop.f32.mrb[0].mxu0
        %1041 = vmatprep.mubr.bf16.mxu0 0
        %1042 = vmatmul.mubr.bf16.gmra.mrb[0].mxu0 %v892
        %v1043 = vpop.f32.mrb[0].mxu0
        %v1044 = vadd.f32 0.0, %v1043
        %v1045 = vpop.f32.mrb[0].mxu0
        %v1046 = vpop.f32.mrb[0].mxu0
        %v1047 = vadd.f32 0.0, %v1046
        %v1048 = vpop.f32.mrb[0].mxu0
        %1049 = vmatprep.mubr.bf16.mxu0 0
        %1050 = vmatmul.mubr.bf16.gmra.mrb[0].mxu0 %v895
        %v1051 = vpop.f32.mrb[0].mxu0
        %v1052 = vadd.f32 0.0, %v1051
        %v1053 = vpop.f32.mrb[0].mxu0
        %v1054 = vpop.f32.mrb[0].mxu0
        %v1055 = vadd.f32 0.0, %v1054
        %v1056 = vpop.f32.mrb[0].mxu0
        %1057 = vdwg.mxu0
        %v1058 = vadd.f32 %v586, %v932
        %v1059 = vadd.f32 %v589, %v935
        %v1060 = vadd.f32 %v594, %v940
        %v1061 = vadd.f32 %v597, %v943
        %v1062 = vadd.f32 %v602, %v948
        %v1063 = vadd.f32 %v605, %v951
        %v1064 = vadd.f32 %v610, %v956
        %v1065 = vadd.f32 %v613, %v959
        %v1066 = vadd.f32 %v618, %v964
        %v1067 = vadd.f32 %v621, %v967
        %v1068 = vadd.f32 %v626, %v972
        %v1069 = vadd.f32 %v629, %v975
        %v1070 = vadd.f32 %v634, %v980
        %v1071 = vadd.f32 %v637, %v983
        %v1072 = vadd.f32 %v642, %v988
        %v1073 = vadd.f32 %v645, %v991
        %v1074 = vadd.f32 %v650, %v996
        %v1075 = vadd.f32 %v653, %v999
        %v1076 = vadd.f32 %v658, %v1004
        %v1077 = vadd.f32 %v661, %v1007
        %v1078 = vadd.f32 %v666, %v1012
        %v1079 = vadd.f32 %v669, %v1015
        %v1080 = vadd.f32 %v674, %v1020
        %v1081 = vadd.f32 %v677, %v1023
        %v1082 = vadd.f32 %v682, %v1028
        %v1083 = vadd.f32 %v685, %v1031
        %v1084 = vadd.f32 %v690, %v1036
        %v1085 = vadd.f32 %v693, %v1039
        %v1086 = vadd.f32 %v698, %v1044
        %v1087 = vadd.f32 %v701, %v1047
        %v1088 = vadd.f32 %v706, %v1052
        %v1089 = vadd.f32 %v709, %v1055
        %v1090 = vld [vmem:[%s2] sm:$0x1]
        %v1092 = vlaneseq
        %v1093 = vshrl.u32 %v1092, 7
        %v1094 = vsub.s32 0, %v1093
        %v1095 = vrot.slane %v1090, %v1094
        %v1097 = vadd.f32 %v1058, %v1095
        %v1098 = vadd.f32 %v1059, %v1095
        %v1099 = vadd.f32 %v1060, %v1095
        %v1100 = vadd.f32 %v1061, %v1095
        %v1101 = vadd.f32 %v1062, %v1095
        %v1102 = vadd.f32 %v1063, %v1095
        %v1103 = vadd.f32 %v1064, %v1095
        %v1104 = vadd.f32 %v1065, %v1095
        %v1105 = vadd.f32 %v1066, %v1095
        %v1106 = vadd.f32 %v1067, %v1095
        %v1107 = vadd.f32 %v1068, %v1095
        %v1108 = vadd.f32 %v1069, %v1095
        %v1109 = vadd.f32 %v1070, %v1095
        %v1110 = vadd.f32 %v1071, %v1095
        %v1111 = vadd.f32 %v1072, %v1095
        %v1112 = vadd.f32 %v1073, %v1095
        %v1113 = vadd.f32 %v1074, %v1095
        %v1114 = vadd.f32 %v1075, %v1095
        %v1115 = vadd.f32 %v1076, %v1095
        %v1116 = vadd.f32 %v1077, %v1095
        %v1117 = vadd.f32 %v1078, %v1095
        %v1118 = vadd.f32 %v1079, %v1095
        %v1119 = vadd.f32 %v1080, %v1095
        %v1120 = vadd.f32 %v1081, %v1095
        %v1121 = vadd.f32 %v1082, %v1095
        %v1122 = vadd.f32 %v1083, %v1095
        %v1123 = vadd.f32 %v1084, %v1095
        %v1124 = vadd.f32 %v1085, %v1095
        %v1125 = vadd.f32 %v1086, %v1095
        %v1126 = vadd.f32 %v1087, %v1095
        %v1127 = vadd.f32 %v1088, %v1095
        %v1128 = vadd.f32 %v1089, %v1095
        %v1129 = vmax.f32 %v1097, 0.0
        %v1130 = vmax.f32 %v1098, 0.0
        %v1131 = vmax.f32 %v1099, 0.0
        %v1132 = vmax.f32 %v1100, 0.0
        %v1133 = vmax.f32 %v1101, 0.0
        %v1134 = vmax.f32 %v1102, 0.0
        %v1135 = vmax.f32 %v1103, 0.0
        %v1136 = vmax.f32 %v1104, 0.0
        %v1137 = vmax.f32 %v1105, 0.0
        %v1138 = vmax.f32 %v1106, 0.0
        %v1139 = vmax.f32 %v1107, 0.0
        %v1140 = vmax.f32 %v1108, 0.0
        %v1141 = vmax.f32 %v1109, 0.0
        %v1142 = vmax.f32 %v1110, 0.0
        %v1143 = vmax.f32 %v1111, 0.0
        %v1144 = vmax.f32 %v1112, 0.0
        %v1145 = vmax.f32 %v1113, 0.0
        %v1146 = vmax.f32 %v1114, 0.0
        %v1147 = vmax.f32 %v1115, 0.0
        %v1148 = vmax.f32 %v1116, 0.0
        %v1149 = vmax.f32 %v1117, 0.0
        %v1150 = vmax.f32 %v1118, 0.0
        %v1151 = vmax.f32 %v1119, 0.0
        %v1152 = vmax.f32 %v1120, 0.0
        %v1153 = vmax.f32 %v1121, 0.0
        %v1154 = vmax.f32 %v1122, 0.0
        %v1155 = vmax.f32 %v1123, 0.0
        %v1156 = vmax.f32 %v1124, 0.0
        %v1157 = vmax.f32 %v1125, 0.0
        %v1158 = vmax.f32 %v1126, 0.0
        %v1159 = vmax.f32 %v1127, 0.0
        %v1160 = vmax.f32 %v1128, 0.0
        %v1161 = vpack.c.bf16 %v1130, %v1129
        %v1162 = vpack.c.bf16 %v1132, %v1131
        %v1163 = vpack.c.bf16 %v1134, %v1133
        %v1164 = vpack.c.bf16 %v1136, %v1135
        %v1165 = vpack.c.bf16 %v1138, %v1137
        %v1166 = vpack.c.bf16 %v1140, %v1139
        %v1167 = vpack.c.bf16 %v1142, %v1141
        %v1168 = vpack.c.bf16 %v1144, %v1143
        %v1169 = vpack.c.bf16 %v1146, %v1145
        %v1170 = vpack.c.bf16 %v1148, %v1147
        %v1171 = vpack.c.bf16 %v1150, %v1149
        %v1172 = vpack.c.bf16 %v1152, %v1151
        %v1173 = vpack.c.bf16 %v1154, %v1153
        %v1174 = vpack.c.bf16 %v1156, %v1155
        %v1175 = vpack.c.bf16 %v1158, %v1157
        %v1176 = vpack.c.bf16 %v1160, %v1159
        %v1193 = vunpack.c.l.b16 %v1161
        %v1194 = vunpack.c.h.b16 %v1161
        %v1195 = vunpack.c.l.b16 %v1162
        %v1196 = vunpack.c.h.b16 %v1162
        %v1197 = vunpack.c.l.b16 %v1163
        %v1198 = vunpack.c.h.b16 %v1163
        %v1199 = vunpack.c.l.b16 %v1164
        %v1200 = vunpack.c.h.b16 %v1164
        %v1201 = vunpack.c.l.b16 %v1165
        %v1202 = vunpack.c.h.b16 %v1165
        %v1203 = vunpack.c.l.b16 %v1166
        %v1204 = vunpack.c.h.b16 %v1166
        %v1205 = vunpack.c.l.b16 %v1167
        %v1206 = vunpack.c.h.b16 %v1167
        %v1207 = vunpack.c.l.b16 %v1168
        %v1208 = vunpack.c.h.b16 %v1168
        %v1209 = vunpack.c.l.b16 %v1169
        %v1210 = vunpack.c.h.b16 %v1169
        %v1211 = vunpack.c.l.b16 %v1170
        %v1212 = vunpack.c.h.b16 %v1170
        %v1213 = vunpack.c.l.b16 %v1171
        %v1214 = vunpack.c.h.b16 %v1171
        %v1215 = vunpack.c.l.b16 %v1172
        %v1216 = vunpack.c.h.b16 %v1172
        %v1217 = vunpack.c.l.b16 %v1173
        %v1218 = vunpack.c.h.b16 %v1173
        %v1219 = vunpack.c.l.b16 %v1174
        %v1220 = vunpack.c.h.b16 %v1174
        %v1221 = vunpack.c.l.b16 %v1175
        %v1222 = vunpack.c.h.b16 %v1175
        %v1223 = vunpack.c.l.b16 %v1176
        %v1224 = vunpack.c.h.b16 %v1176
        %v1225 = vpack.c.b16 %v1193, %v1193
        %v1226 = vpack.c.b16 %v1194, %v1194
        %v1227 = vpack.c.b16 %v1195, %v1195
        %v1228 = vpack.c.b16 %v1196, %v1196
        %v1229 = vpack.c.b16 %v1197, %v1197
        %v1230 = vpack.c.b16 %v1198, %v1198
        %v1231 = vpack.c.b16 %v1199, %v1199
        %v1232 = vpack.c.b16 %v1200, %v1200
        %v1233 = vpack.c.b16 %v1201, %v1201
        %v1234 = vpack.c.b16 %v1202, %v1202
        %v1235 = vpack.c.b16 %v1203, %v1203
        %v1236 = vpack.c.b16 %v1204, %v1204
        %v1237 = vpack.c.b16 %v1205, %v1205
        %v1238 = vpack.c.b16 %v1206, %v1206
        %v1239 = vpack.c.b16 %v1207, %v1207
        %v1240 = vpack.c.b16 %v1208, %v1208
        %v1241 = vpack.c.b16 %v1209, %v1209
        %v1242 = vpack.c.b16 %v1210, %v1210
        %v1243 = vpack.c.b16 %v1211, %v1211
        %v1244 = vpack.c.b16 %v1212, %v1212
        %v1245 = vpack.c.b16 %v1213, %v1213
        %v1246 = vpack.c.b16 %v1214, %v1214
        %v1247 = vpack.c.b16 %v1215, %v1215
        %v1248 = vpack.c.b16 %v1216, %v1216
        %v1249 = vpack.c.b16 %v1217, %v1217
        %v1250 = vpack.c.b16 %v1218, %v1218
        %v1251 = vpack.c.b16 %v1219, %v1219
        %v1252 = vpack.c.b16 %v1220, %v1220
        %v1253 = vpack.c.b16 %v1221, %v1221
        %v1254 = vpack.c.b16 %v1222, %v1222
        %v1255 = vpack.c.b16 %v1223, %v1223
        %v1256 = vpack.c.b16 %v1224, %v1224
        %1289 = vst [vmem:[%s163] sm:$0xf] %v1225
        %1290 = vst [vmem:[%s163 + $0x4] sm:$0xf] %v1226
        %1291 = vst [vmem:[%s163 + $0x8] sm:$0xf] %v1227
        %1292 = vst [vmem:[%s163 + $0xc] sm:$0xf] %v1228
        %1293 = vst [vmem:[%s163 + $0x10] sm:$0xf] %v1229
        %1294 = vst [vmem:[%s163 + $0x14] sm:$0xf] %v1230
        %1295 = vst [vmem:[%s163 + $0x18] sm:$0xf] %v1231
        %1296 = vst [vmem:[%s163 + $0x1c] sm:$0xf] %v1232
        %1297 = vst [vmem:[%s163 + $0x20] sm:$0xf] %v1233
        %1298 = vst [vmem:[%s163 + $0x24] sm:$0xf] %v1234
        %1299 = vst [vmem:[%s163 + $0x28] sm:$0xf] %v1235
        %1300 = vst [vmem:[%s163 + $0x2c] sm:$0xf] %v1236
        %1301 = vst [vmem:[%s163 + $0x30] sm:$0xf] %v1237
        %1302 = vst [vmem:[%s163 + $0x34] sm:$0xf] %v1238
        %1303 = vst [vmem:[%s163 + $0x38] sm:$0xf] %v1239
        %1304 = vst [vmem:[%s163 + $0x3c] sm:$0xf] %v1240
        %1305 = vst [vmem:[%s163 + $0x40] sm:$0xf] %v1241
        %1306 = vst [vmem:[%s163 + $0x44] sm:$0xf] %v1242
        %1307 = vst [vmem:[%s163 + $0x48] sm:$0xf] %v1243
        %1308 = vst [vmem:[%s163 + $0x4c] sm:$0xf] %v1244
        %1309 = vst [vmem:[%s163 + $0x50] sm:$0xf] %v1245
        %1310 = vst [vmem:[%s163 + $0x54] sm:$0xf] %v1246
        %1311 = vst [vmem:[%s163 + $0x58] sm:$0xf] %v1247
        %1312 = vst [vmem:[%s163 + $0x5c] sm:$0xf] %v1248
        %1313 = vst [vmem:[%s163 + $0x60] sm:$0xf] %v1249
        %1314 = vst [vmem:[%s163 + $0x64] sm:$0xf] %v1250
        %1315 = vst [vmem:[%s163 + $0x68] sm:$0xf] %v1251
        %1316 = vst [vmem:[%s163 + $0x6c] sm:$0xf] %v1252
        %1317 = vst [vmem:[%s163 + $0x70] sm:$0xf] %v1253
        %1318 = vst [vmem:[%s163 + $0x74] sm:$0xf] %v1254
        %1319 = vst [vmem:[%s163 + $0x78] sm:$0xf] %v1255
        %1320 = vst [vmem:[%s163 + $0x7c] sm:$0xf] %v1256
        %s1321 = sand.u32 %s93, 1
        %s1322 = scalar_lea.sflag [#allocation3], %s1321
        %s1323 = sand.u32 %s93, 1
        %s1324 = smul.addr %s1323, 128
        %s1325 = scalar_lea.vmem [#allocation2], %s1324
        // Predicated region
        $region33: #{tpu_custom_call.1} parent=31 // pred_check
          %p1326 = pneg %p103
        $region34: #{tpu_custom_call.1} parent=31 // pred_check_branch
          %1328 = sbr.rel (%p1326) target = $region36
        $region35: #{tpu_custom_call.1} parent=31 // pred_region
          %s1330 = ssub.s32 2048, 2048
          %1331 = vsyncadd %s1322, %s1330
          %s1332 = smul.addr %s17, 32
          %s1333 = smul.addr %s1332, 64
          %s1334 = scalar_lea.hbm %s3, %s1333
          %s1335 = sshll.u32 %s1325, 4
          %s1336 = int_to_ptr.vmem [resolvable:$true] %s1335
          %1341 = dma.vmem_to_hbm [thread:$0]  %s1336, 2048, %s1334, %s1322, 64, 64, 4
        $region36: #{tpu_custom_call.1} parent=31 // pred_fallthru
          _
      $region32: #{tpu_custom_call.1} parent=5 // pred_fallthru
        _
      %p1342 = scmp.le.s32.totalorder 2, %s12
      // Predicated region
      $region37: #{tpu_custom_call.1} parent=5 // pred_check
        %p1343 = pneg %p1342
      $region38: #{tpu_custom_call.1} parent=5 // pred_check_branch
        %1345 = sbr.rel (%p1343) target = $region40
      $region39: #{tpu_custom_call.1} parent=5 // pred_region
        %s1346 = ssub.s32 %s12, 2
        // Predicated region
        $region41: #{tpu_custom_call.1} parent=39 // pred_check
          %p1347 = pneg %p109
        $region42: #{tpu_custom_call.1} parent=39 // pred_check_branch
          %1349 = sbr.rel (%p1347) target = $region44
        $region43: #{tpu_custom_call.1} parent=39 // pred_region
          %s1350 = sand.u32 %s94, 1
          %s1351 = scalar_lea.sflag [#allocation3], %s1350
          %s1352 = sand.u32 %s94, 1
          %s1353 = smul.addr %s1352, 128
          %s1354 = scalar_lea.vmem [#allocation2], %s1353
          %1355 = dma.done %s1351, 2048
        $region44: #{tpu_custom_call.1} parent=39 // pred_fallthru
          _
      $region40: #{tpu_custom_call.1} parent=5 // pred_fallthru
        _
    $region6: #{tpu_custom_call.1} parent=1 // loop_footer
      %s16 = sadd.s32 1, %s12
    $region7: #{tpu_custom_call.1} parent=1 // loop_footer_branch
      %11 = sbr.rel target = $region3
    $region8: #{tpu_custom_call.1} parent=1 // loop_exit
      _
    %1356 = vsyncpa [#allocation3], 1
    %s1357 = scalar_lea.sflag [#allocation3], 1
    %1358 = vsyncpa %s1357, 1

</llo_original>
